<compile_context>
chip_gen: v5e
topology: v5e:2x2
jax: 0.10.0
libtpu: 0.0.40
codegen_flags: <defaults>
</compile_context>

<pallas_src>
import functools

import jax
import jax.numpy as jnp
from jax import lax
from jax.experimental import pallas as pl
from jax.experimental.pallas import tpu as pltpu

HEAD_W = 128  # fused actor|critic head padded to one lane-dense MXU tile


def _round_up(n, m):
    return ((n + m - 1) // m) * m


def actor_critic_kernel(x_ref, w1_ref, b1_ref, w2_ref, b2_ref,
                        wh_ref, bh_ref, out_ref, *, output_size):
    x = x_ref[...]

    # fc1 + relu
    h1 = jnp.dot(x, w1_ref[...], preferred_element_type=jnp.float32) + b1_ref[...]
    h1 = jnp.maximum(h1, 0.0)

    # TODO(synk): nn.Dropout(p=0.2) is identity in eval mode; training-mode
    # masking (pltpu.prng_seed + prng_random_bits) is not implemented.

    # fc2 + relu
    h2 = jnp.dot(h1.astype(w2_ref.dtype), w2_ref[...],
                 preferred_element_type=jnp.float32) + b2_ref[...]
    h2 = jnp.maximum(h2, 0.0)

    # Fused actor|critic head: ONE matmul, lane-dense [bb, 128] result.
    head = jnp.dot(h2.astype(wh_ref.dtype), wh_ref[...],
                   preferred_element_type=jnp.float32) + bh_ref[...]

    col = lax.broadcasted_iota(jnp.int32, head.shape, 1)
    is_action = col < output_size

    # softmax(dim=-1) restricted to the real action columns only.
    logits = jnp.where(is_action, head, -jnp.inf)
    m = jnp.max(logits, axis=-1, keepdims=True)
    e = jnp.exp(logits - m)                                   # padded cols -> 0
    # Exact normalization (approx reciprocal broke the sum-to-1 invariant).
    probs = e / jnp.sum(e, axis=-1, keepdims=True)

    # cols [0, A): policy probs; col A: critic value; cols > A: don't-care.
    out_ref[...] = jnp.where(is_action, probs, head)


def actor_critic_forward(x, params, *, block_b=128, compute_dtype=jnp.float32):
    """x: [B, input_size] float32. params: dict of transposed weights/biases."""
    B, in_size = x.shape
    A = params["wa"].shape[1]
    assert A + 1 <= HEAD_W, "output_size + 1 must fit in the 128-wide fused head"

    # Fuse actor + critic weights/biases into one lane-dense [H, 128] head.
    w_head = jnp.concatenate([params["wa"], params["wc"]], axis=1)
    w_head = jnp.pad(w_head, ((0, 0), (0, HEAD_W - (A + 1))))
    b_head = jnp.concatenate([params["ba"], params["bc"]], axis=1)
    b_head = jnp.pad(b_head, ((0, 0), (0, HEAD_W - (A + 1))))

    # Batch tile: multiple of 8 sublanes, up to `block_b` rows per grid step.
    bb = min(_round_up(B, 8), _round_up(block_b, 8))
    B_pad = _round_up(B, bb)
    if B_pad != B:
        x = jnp.pad(x, ((0, B_pad - B), (0, 0)))
    grid = (B_pad // bb,)

    x = x.astype(compute_dtype)
    w1 = params["w1"].astype(compute_dtype)
    w2 = params["w2"].astype(compute_dtype)
    w_head = w_head.astype(compute_dtype)
    b1 = params["b1"]
    b2 = params["b2"]

    def resident(arr):
        # Constant block index -> weights/biases stay VMEM-resident across
        # grid iterations (DMA'd once, reused by every batch tile).
        return pl.BlockSpec(arr.shape, lambda i: (0, 0))

    out = pl.pallas_call(
        functools.partial(actor_critic_kernel, output_size=A),
        out_shape=jax.ShapeDtypeStruct((B_pad, HEAD_W), jnp.float32),
        grid=grid,
        in_specs=[
            pl.BlockSpec((bb, in_size), lambda i: (i, 0)),
            resident(w1), resident(b1),
            resident(w2), resident(b2),
            resident(w_head), resident(b_head),
        ],
        out_specs=pl.BlockSpec((bb, HEAD_W), lambda i: (i, 0)),
        compiler_params=pltpu.CompilerParams(
            dimension_semantics=("parallel",)),
    )(x, w1, b1, w2, b2, w_head, b_head)

    policy = out[:B, :A]
    value = out[:B, A:A + 1]
    return policy, value


def actor_critic_reference(x, params):
    """Pure-JAX reference matching the PyTorch forward (eval-mode dropout)."""
    h1 = jnp.maximum(x @ params["w1"] + params["b1"], 0.0)
    h2 = jnp.maximum(h1 @ params["w2"] + params["b2"], 0.0)
    logits = h2 @ params["wa"] + params["ba"]
    policy = jax.nn.softmax(logits, axis=-1)
    value = h2 @ params["wc"] + params["bc"]
    return policy, value


def init_params(key, input_size, hidden_size, output_size):
    """Deterministic init mimicking nn.Linear default (uniform +-1/sqrt(fan_in)).
    Weights stored as [in_features, out_features] (transposed vs. PyTorch)."""
    def linear(k, fan_in, fan_out):
        kw, kb = jax.random.split(k)
        bound = 1.0 / jnp.sqrt(fan_in)
        w = jax.random.uniform(kw, (fan_in, fan_out), jnp.float32, -bound, bound)
        b = jax.random.uniform(kb, (1, fan_out), jnp.float32, -bound, bound)
        return w, b

    k1, k2, k3, k4 = jax.random.split(key, 4)
    w1, b1 = linear(k1, input_size, hidden_size)
    w2, b2 = linear(k2, hidden_size, hidden_size)
    wa, ba = linear(k3, hidden_size, output_size)
    wc, bc = linear(k4, hidden_size, 1)
    return {"w1": w1, "b1": b1, "w2": w2, "b2": b2,
            "wa": wa, "ba": ba, "wc": wc, "bc": bc}


if __name__ == "__main__":
    input_size, hidden_size, output_size = 16, 32, 8
    batch = 2

    key = jax.random.PRNGKey(0)
    kx, kp = jax.random.split(key)
    x = jax.random.normal(kx, (batch, input_size), dtype=jnp.float32)
    params = init_params(kp, input_size, hidden_size, output_size)

    fwd = jax.jit(actor_critic_forward)
    policy, value = fwd(x, params)
    jax.block_until_ready((policy, value))

    # sanity: shapes match the PyTorch module, softmax rows sum to ~1
    assert policy.shape == (batch, output_size)
    assert value.shape == (batch, 1)
    assert jnp.allclose(jnp.sum(policy, axis=-1), 1.0, atol=1e-4)
    assert bool(jnp.all(jnp.isfinite(value)))

    # correctness vs. pure-JAX reference
    ref_policy, ref_value = actor_critic_reference(x, params)
    assert jnp.allclose(policy, ref_policy, atol=2e-5, rtol=2e-5)
    assert jnp.allclose(value, ref_value, atol=2e-5, rtol=2e-5)

    print("KERNEL_OK")
</pallas_src>

<mosaic_0001>
module attributes {stable_mosaic.version = 11 : i64} {
  func.func @actor_critic_kernel(%arg0: i32, %arg1: memref<8x16xf32, #tpu.memory_space<vmem>>, %arg2: memref<16x32xf32, #tpu.memory_space<vmem>>, %arg3: memref<1x32xf32, #tpu.memory_space<vmem>>, %arg4: memref<32x32xf32, #tpu.memory_space<vmem>>, %arg5: memref<1x32xf32, #tpu.memory_space<vmem>>, %arg6: memref<32x128xf32, #tpu.memory_space<vmem>>, %arg7: memref<1x128xf32, #tpu.memory_space<vmem>>, %arg8: memref<8x128xf32, #tpu.memory_space<vmem>>) attributes {dimension_semantics = [#tpu.dimension_semantics<parallel>], iteration_bounds = array<i64: 1>, scalar_prefetch = 0 : i64, scratch_operands = 0 : i64, tpu.core_type = #tpu.core_type<tc>, window_params = [{transform_indices = @transform_0, window_bounds = array<i64: 8, 16>}, {pipeline_mode = #tpu.pipeline_mode<synchronous>, transform_indices = @transform_1, window_bounds = array<i64: 16, 32>}, {pipeline_mode = #tpu.pipeline_mode<synchronous>, transform_indices = @transform_2, window_bounds = array<i64: 1, 32>}, {pipeline_mode = #tpu.pipeline_mode<synchronous>, transform_indices = @transform_3, window_bounds = array<i64: 32, 32>}, {pipeline_mode = #tpu.pipeline_mode<synchronous>, transform_indices = @transform_4, window_bounds = array<i64: 1, 32>}, {pipeline_mode = #tpu.pipeline_mode<synchronous>, transform_indices = @transform_5, window_bounds = array<i64: 32, 128>}, {pipeline_mode = #tpu.pipeline_mode<synchronous>, transform_indices = @transform_6, window_bounds = array<i64: 1, 128>}, {transform_indices = @transform_7, window_bounds = array<i64: 8, 128>}]} {
    %c0 = arith.constant 0 : index
    %c0_0 = arith.constant 0 : index
    %0 = vector.load %arg1[%c0, %c0_0] : memref<8x16xf32, #tpu.memory_space<vmem>>, vector<8x16xf32>
    %c0_1 = arith.constant 0 : index
    %c0_2 = arith.constant 0 : index
    %1 = vector.load %arg2[%c0_1, %c0_2] : memref<16x32xf32, #tpu.memory_space<vmem>>, vector<16x32xf32>
    %cst = arith.constant dense<0.000000e+00> : vector<8x32xf32>
    %2 = tpu.matmul %0, %1, %cst {dimension_numbers = #tpu.dot_dimension_numbers<[1], [0], [0], [1], [0, 0, 1, 1], [], []>} : vector<8x16xf32>, vector<16x32xf32>, vector<8x32xf32> -> vector<8x32xf32>
    %c0_3 = arith.constant 0 : index
    %c0_4 = arith.constant 0 : index
    %3 = vector.load %arg3[%c0_3, %c0_4] : memref<1x32xf32, #tpu.memory_space<vmem>>, vector<1x32xf32>
    %4 = vector.broadcast %3 : vector<1x32xf32> to vector<8x32xf32>
    %5 = arith.addf %2, %4 : vector<8x32xf32>
    %cst_5 = arith.constant 0.000000e+00 : f32
    %6 = vector.broadcast %cst_5 : f32 to vector<8x32xf32>
    %7 = arith.maximumf %5, %6 : vector<8x32xf32>
    %c0_6 = arith.constant 0 : index
    %c0_7 = arith.constant 0 : index
    %8 = vector.load %arg4[%c0_6, %c0_7] : memref<32x32xf32, #tpu.memory_space<vmem>>, vector<32x32xf32>
    %cst_8 = arith.constant dense<0.000000e+00> : vector<8x32xf32>
    %9 = tpu.matmul %7, %8, %cst_8 {dimension_numbers = #tpu.dot_dimension_numbers<[1], [0], [0], [1], [0, 0, 1, 1], [], []>} : vector<8x32xf32>, vector<32x32xf32>, vector<8x32xf32> -> vector<8x32xf32>
    %c0_9 = arith.constant 0 : index
    %c0_10 = arith.constant 0 : index
    %10 = vector.load %arg5[%c0_9, %c0_10] : memref<1x32xf32, #tpu.memory_space<vmem>>, vector<1x32xf32>
    %11 = vector.broadcast %10 : vector<1x32xf32> to vector<8x32xf32>
    %12 = arith.addf %9, %11 : vector<8x32xf32>
    %cst_11 = arith.constant 0.000000e+00 : f32
    %13 = vector.broadcast %cst_11 : f32 to vector<8x32xf32>
    %14 = arith.maximumf %12, %13 : vector<8x32xf32>
    %c0_12 = arith.constant 0 : index
    %c0_13 = arith.constant 0 : index
    %15 = vector.load %arg6[%c0_12, %c0_13] : memref<32x128xf32, #tpu.memory_space<vmem>>, vector<32x128xf32>
    %cst_14 = arith.constant dense<0.000000e+00> : vector<8x128xf32>
    %16 = tpu.matmul %14, %15, %cst_14 {dimension_numbers = #tpu.dot_dimension_numbers<[1], [0], [0], [1], [0, 0, 1, 1], [], []>} : vector<8x32xf32>, vector<32x128xf32>, vector<8x128xf32> -> vector<8x128xf32>
    %c0_15 = arith.constant 0 : index
    %c0_16 = arith.constant 0 : index
    %17 = vector.load %arg7[%c0_15, %c0_16] : memref<1x128xf32, #tpu.memory_space<vmem>>, vector<1x128xf32>
    %18 = vector.broadcast %17 : vector<1x128xf32> to vector<8x128xf32>
    %19 = arith.addf %16, %18 : vector<8x128xf32>
    %20 = tpu.iota {dimensions = array<i32: 1>} : vector<8x128xi32>
    %c8_i32 = arith.constant 8 : i32
    %21 = vector.broadcast %c8_i32 : i32 to vector<8x128xi32>
    %22 = arith.cmpi slt, %20, %21 : vector<8x128xi32>
    %cst_17 = arith.constant 0xFF800000 : f32
    %23 = vector.broadcast %cst_17 : f32 to vector<8x128xf32>
    %24 = arith.select %22, %19, %23 : vector<8x128xi1>, vector<8x128xf32>
    %cst_18 = arith.constant dense<0xFF800000> : vector<8xf32>
    %25 = vector.multi_reduction <maximumf>, %24, %cst_18 [1] : vector<8x128xf32> to vector<8xf32>
    %26 = vector.shape_cast %25 : vector<8xf32> to vector<8x1xf32>
    %27 = vector.broadcast %26 : vector<8x1xf32> to vector<8x128xf32>
    %28 = arith.subf %24, %27 : vector<8x128xf32>
    %29 = math.exp %28 : vector<8x128xf32>
    %cst_19 = arith.constant dense<0.000000e+00> : vector<8xf32>
    %30 = vector.multi_reduction <add>, %29, %cst_19 [1] : vector<8x128xf32> to vector<8xf32>
    %31 = vector.shape_cast %30 : vector<8xf32> to vector<8x1xf32>
    %32 = vector.broadcast %31 : vector<8x1xf32> to vector<8x128xf32>
    %33 = arith.divf %29, %32 : vector<8x128xf32>
    %34 = arith.select %22, %33, %19 : vector<8x128xi1>, vector<8x128xf32>
    %c0_20 = arith.constant 0 : index
    %c0_21 = arith.constant 0 : index
    %35 = vector.load %arg8[%c0_20, %c0_21] : memref<8x128xf32, #tpu.memory_space<vmem>>, vector<8x128xf32>
    tpu.vector_store %arg8[%c0_20, %c0_21], %34 {strides = array<i32>} : memref<8x128xf32, #tpu.memory_space<vmem>>, vector<8x128xf32>,
    return
  }
  func.func @transform_0(%arg0: i32) -> (i32, i32) {
    %c0_i32 = arith.constant 0 : i32
    %c0_i32_0 = arith.constant 0 : i32
    return %arg0, %c0_i32 : i32, i32
  }
  func.func @transform_1(%arg0: i32) -> (i32, i32) {
    %c0_i32 = arith.constant 0 : i32
    %c0_i32_0 = arith.constant 0 : i32
    %c0_i32_1 = arith.constant 0 : i32
    return %c0_i32, %c0_i32_0 : i32, i32
  }
  func.func @transform_2(%arg0: i32) -> (i32, i32) {
    %c0_i32 = arith.constant 0 : i32
    %c0_i32_0 = arith.constant 0 : i32
    %c0_i32_1 = arith.constant 0 : i32
    return %c0_i32, %c0_i32_0 : i32, i32
  }
  func.func @transform_3(%arg0: i32) -> (i32, i32) {
    %c0_i32 = arith.constant 0 : i32
    %c0_i32_0 = arith.constant 0 : i32
    %c0_i32_1 = arith.constant 0 : i32
    return %c0_i32, %c0_i32_0 : i32, i32
  }
  func.func @transform_4(%arg0: i32) -> (i32, i32) {
    %c0_i32 = arith.constant 0 : i32
    %c0_i32_0 = arith.constant 0 : i32
    %c0_i32_1 = arith.constant 0 : i32
    return %c0_i32, %c0_i32_0 : i32, i32
  }
  func.func @transform_5(%arg0: i32) -> (i32, i32) {
    %c0_i32 = arith.constant 0 : i32
    %c0_i32_0 = arith.constant 0 : i32
    %c0_i32_1 = arith.constant 0 : i32
    return %c0_i32, %c0_i32_0 : i32, i32
  }
  func.func @transform_6(%arg0: i32) -> (i32, i32) {
    %c0_i32 = arith.constant 0 : i32
    %c0_i32_0 = arith.constant 0 : i32
    %c0_i32_1 = arith.constant 0 : i32
    return %c0_i32, %c0_i32_0 : i32, i32
  }
  func.func @transform_7(%arg0: i32) -> (i32, i32) {
    %c0_i32 = arith.constant 0 : i32
    %c0_i32_0 = arith.constant 0 : i32
    return %arg0, %c0_i32 : i32, i32
  }
}

</mosaic_0001>

<llo_original>
// kernel: actor_critic_forward.1
$region0: #{actor_critic_forward.1}
  #allocation0 [shape = 'u32[]', space=smem, size = 0x4, offset = 0x4, fixed_abs, tag = 'smem constant byte address 0x4 - core index']
  #allocation1 [shape = 'u32[72,128]{1,0:T(1,128)}', space=vmem, size = 0x9000, scoped, tag = 'internal scratch']
  %s0 = inlined_call_operand.vmem [shape: f32[8,16], index: 0, kind: input, shape index: {}]
  %s1 = inlined_call_operand.vmem [shape: f32[16,32], index: 1, kind: input, shape index: {}]
  %s2 = inlined_call_operand.vmem [shape: f32[1,32], index: 2, kind: input, shape index: {}]
  %s3 = inlined_call_operand.vmem [shape: f32[32,32], index: 3, kind: input, shape index: {}]
  %s4 = inlined_call_operand.vmem [shape: f32[1,32], index: 4, kind: input, shape index: {}]
  %s5 = inlined_call_operand.vmem [shape: f32[32,128], index: 5, kind: input, shape index: {}]
  %s6 = inlined_call_operand.vmem [shape: f32[1,128], index: 6, kind: input, shape index: {}]
  %s7 = inlined_call_operand.vmem [shape: f32[8,128], index: 7, kind: output, shape index: {}]
  %s8 = sld [smem:[#allocation0]]
  $region38: #{actor_critic_forward.1} parent=0
    _
  %s10 = ssub.s32 1, %s8
  %s11 = scalar_select 0, %s10, %s8
  // Predicated region
  $region2: #{actor_critic_forward.1} parent=0 // pred_check
    _
  $region3: #{actor_critic_forward.1} parent=0 // pred_check_branch
    %13 = sbr.rel (0) target = $region5
  $region4: #{actor_critic_forward.1} parent=0 // pred_region
    _
  $region5: #{actor_critic_forward.1} parent=0 // pred_fallthru
    _
  // Predicated region
  $region6: #{actor_critic_forward.1} parent=0 // pred_check
    _
  $region7: #{actor_critic_forward.1} parent=0 // pred_check_branch
    %15 = sbr.rel (0) target = $region9
  $region8: #{actor_critic_forward.1} parent=0 // pred_region
    _
  $region9: #{actor_critic_forward.1} parent=0 // pred_fallthru
    _
  // Predicated region
  $region10: #{actor_critic_forward.1} parent=0 // pred_check
    _
  $region11: #{actor_critic_forward.1} parent=0 // pred_check_branch
    %17 = sbr.rel (0) target = $region13
  $region12: #{actor_critic_forward.1} parent=0 // pred_region
    _
  $region13: #{actor_critic_forward.1} parent=0 // pred_fallthru
    _
  // Predicated region
  $region14: #{actor_critic_forward.1} parent=0 // pred_check
    _
  $region15: #{actor_critic_forward.1} parent=0 // pred_check_branch
    %19 = sbr.rel (0) target = $region17
  $region16: #{actor_critic_forward.1} parent=0 // pred_region
    _
  $region17: #{actor_critic_forward.1} parent=0 // pred_fallthru
    _
  // Predicated region
  $region18: #{actor_critic_forward.1} parent=0 // pred_check
    _
  $region19: #{actor_critic_forward.1} parent=0 // pred_check_branch
    %21 = sbr.rel (0) target = $region21
  $region20: #{actor_critic_forward.1} parent=0 // pred_region
    _
  $region21: #{actor_critic_forward.1} parent=0 // pred_fallthru
    _
  // Predicated region
  $region22: #{actor_critic_forward.1} parent=0 // pred_check
    _
  $region23: #{actor_critic_forward.1} parent=0 // pred_check_branch
    %23 = sbr.rel (0) target = $region25
  $region24: #{actor_critic_forward.1} parent=0 // pred_region
    _
  $region25: #{actor_critic_forward.1} parent=0 // pred_fallthru
    _
  // Predicated region
  $region26: #{actor_critic_forward.1} parent=0 // pred_check
    _
  $region27: #{actor_critic_forward.1} parent=0 // pred_check_branch
    %25 = sbr.rel (0) target = $region29
  $region28: #{actor_critic_forward.1} parent=0 // pred_region
    _
  $region29: #{actor_critic_forward.1} parent=0 // pred_fallthru
    _
  %v26 = vld [vmem:[%s0] sm:$0xff]
  %v27 = vld [vmem:[%s1] sm:$0xff]
  %v28 = vld [vmem:[%s1 + $0x8] sm:$0xff]
  %v29 = vld [vmem:[%s2] sm:$0x1]
  %v31 = vperm.slane %v29, 0
  %vm33 = vcmask 130048
  %v35 = vsel %vm33, %v26, 0
  %37 = vmatpush.msra.mxu0 0.0
  %38 = vmatpush.msra.mxu0 0.0
  %39 = vmatpush.msra.mxu0 0.0
  %40 = vmatpush.msra.mxu0 0.0
  %41 = vmatpush.msra.mxu0 0.0
  %42 = vmatpush.msra.mxu0 0.0
  %43 = vmatpush.msra.mxu0 0.0
  %44 = vmatpush.msra.mxu0 0.0
  %45 = vmatpush.msra.mxu0 0.0
  %46 = vmatpush.msra.mxu0 0.0
  %47 = vmatpush.msra.mxu0 0.0
  %48 = vmatpush.msra.mxu0 0.0
  %49 = vmatpush.msra.mxu0 0.0
  %50 = vmatpush.msra.mxu0 0.0
  %51 = vmatpush.msra.mxu0 %v28
  %52 = vmatpush.msra.mxu0 %v27
  %53 = vmatmul.f32.gmra.mxu0 %v35
  %v54 = vpop.f32.mrf.mxu0
  %v55 = vadd.f32 %v31, %v54
  %56 = vdwg.mxu0
  %v57 = vmax.f32 %v55, 0.0
  %v58 = vld [vmem:[%s3] sm:$0xff]
  %v59 = vld [vmem:[%s3 + $0x8] sm:$0xff]
  %v60 = vld [vmem:[%s3 + $0x10] sm:$0xff]
  %v61 = vld [vmem:[%s3 + $0x18] sm:$0xff]
  %v62 = vld [vmem:[%s4] sm:$0x1]
  %v64 = vperm.slane %v62, 0
  %vm66 = vcmask 261120
  %v68 = vsel %vm66, %v57, 0
  %70 = vmatpush.msra.mxu0 0.0
  %71 = vmatpush.msra.mxu0 0.0
  %72 = vmatpush.msra.mxu0 0.0
  %73 = vmatpush.msra.mxu0 0.0
  %74 = vmatpush.msra.mxu0 0.0
  %75 = vmatpush.msra.mxu0 0.0
  %76 = vmatpush.msra.mxu0 0.0
  %77 = vmatpush.msra.mxu0 0.0
  %78 = vmatpush.msra.mxu0 0.0
  %79 = vmatpush.msra.mxu0 0.0
  %80 = vmatpush.msra.mxu0 0.0
  %81 = vmatpush.msra.mxu0 0.0
  %82 = vmatpush.msra.mxu0 %v61
  %83 = vmatpush.msra.mxu0 %v60
  %84 = vmatpush.msra.mxu0 %v59
  %85 = vmatpush.msra.mxu0 %v58
  %86 = vmatmul.f32.gmra.mxu0 %v68
  %v87 = vpop.f32.mrf.mxu0
  %v88 = vadd.f32 %v64, %v87
  %89 = vdwg.mxu0
  %v90 = vmax.f32 %v88, 0.0
  %v91 = vld [vmem:[%s5] sm:$0xff]
  %v92 = vld [vmem:[%s5 + $0x8] sm:$0xff]
  %v93 = vld [vmem:[%s5 + $0x10] sm:$0xff]
  %v94 = vld [vmem:[%s5 + $0x18] sm:$0xff]
  %v95 = vld [vmem:[%s6] sm:$0x1]
  %v97 = vperm.slane %v95, 0
  %v100 = vsel %vm66, %v90, 0
  %102 = vmatpush.msra.mxu0 0.0
  %103 = vmatpush.msra.mxu0 0.0
  %104 = vmatpush.msra.mxu0 0.0
  %105 = vmatpush.msra.mxu0 0.0
  %106 = vmatpush.msra.mxu0 0.0
  %107 = vmatpush.msra.mxu0 0.0
  %108 = vmatpush.msra.mxu0 0.0
  %109 = vmatpush.msra.mxu0 0.0
  %110 = vmatpush.msra.mxu0 0.0
  %111 = vmatpush.msra.mxu0 0.0
  %112 = vmatpush.msra.mxu0 0.0
  %113 = vmatpush.msra.mxu0 0.0
  %114 = vmatpush.msra.mxu0 %v94
  %115 = vmatpush.msra.mxu0 %v93
  %116 = vmatpush.msra.mxu0 %v92
  %117 = vmatpush.msra.mxu0 %v91
  %118 = vmatmul.f32.gmra.mxu0 %v100
  %v119 = vpop.f32.mrf.mxu0
  %v120 = vadd.f32 %v97, %v119
  %121 = vdwg.mxu0
  %v122 = vlaneseq
  %v123 = vand.u32 %v122, 127
  %vm124 = vcmp.lt.s32.totalorder %v123, 8
  %v125 = vsel %vm124, %v120, -inf
  %126 = vmax.xlane.f32.xlu0 %v125
  %v127 = vpop.xlane.xlu0 %126
  %v128 = vsub.f32 %v125, %v127
  %v129 = vmul.f32 %v128, 1.442695
  %v130 = vpow.pop %v129
  %131 = vadd.xlane.f32.xlu0 %v130
  %v132 = vpop.xlane.xlu0 %131
  %v133 = vrcp.pop %v132
  %v134 = vmul.f32 %v132, %v133
  %v135 = vsub.f32 1.0, %v134
  %v136 = vmul.f32 %v133, %v135
  %v137 = vadd.f32 %v133, %v136
  %vm138 = vweird.f32 %v132
  %vm139 = vweird.f32 %v133
  %vm140 = vmor %vm138, %vm139
  %v141 = vsel %vm140, %v133, %v137
  %v142 = vand.u32 2147483647, %v132
  %vm143 = vcmp.eq.f32.partialorder %v142, 8.507059e+37
  %v144 = vand.u32 %v132, 2147483648
  %v145 = vor.u32 1.1754944e-38, %v144
  %v146 = vsel %vm143, %v145, %v141
  %v147 = vmul.f32 %v130, %v146
  %v148 = vsel %vm124, %v147, %v120
  %149 = vst [vmem:[%s7] sm:$0xff] %v148
  // Predicated region
  $region30: #{actor_critic_forward.1} parent=0 // pred_check
    _
  $region31: #{actor_critic_forward.1} parent=0 // pred_check_branch
    %151 = sbr.rel (0) target = $region33
  $region32: #{actor_critic_forward.1} parent=0 // pred_region
    _
  $region33: #{actor_critic_forward.1} parent=0 // pred_fallthru
    _
  // Predicated region
  $region34: #{actor_critic_forward.1} parent=0 // pred_check
    _
  $region35: #{actor_critic_forward.1} parent=0 // pred_check_branch
    %153 = sbr.rel (0) target = $region37
  $region36: #{actor_critic_forward.1} parent=0 // pred_region
    _
  $region37: #{actor_critic_forward.1} parent=0 // pred_fallthru
    _

</llo_original>
